<compile_context>
chip_gen: v7x
topology: tpu7x:2x2x1
jax: 0.10.0
libtpu: 0.0.40
codegen_flags: <defaults>
</compile_context>

<pallas_src>
import math
import functools

import jax
import jax.numpy as jnp
from jax import lax
from jax.experimental import pallas as pl
from jax.experimental.pallas import tpu as pltpu


_UNROLL_MAX = 32  # statically unroll the per-token gather below this chunk size


def _src_embedding_kernel(ids_ref, emb_ref, pos_ref, o_ref, *,
                          scale, use_mul, use_pe, chunk, seq_len, vocab):
    """One grid step produces one dense (chunk, E) slab of output tokens.

    ids_ref : SMEM (B*S,) int32   scalar-prefetched flattened token ids
    emb_ref : VMEM (V, E)         embedding table, resident, native dtype
    pos_ref : VMEM (max_len, E)   positional table, resident, native dtype
    o_ref   : VMEM (chunk, E)     output block
    """
    base = pl.program_id(0) * chunk

    def emb_row(tok):
        # nn.Embedding would raise on out-of-range ids; we clamp so the VMEM read is
        # always in bounds (documented deviation from the PyTorch error behaviour).
        idx = jnp.clip(ids_ref[tok], 0, vocab - 1)
        return emb_ref[pl.ds(idx, 1), :].astype(jnp.float32)            # (1, E)

    def pos_row(tok):
        return pos_ref[pl.ds(tok % seq_len, 1), :].astype(jnp.float32)  # (1, E)

    if chunk <= _UNROLL_MAX:
        # Small chunk: statically unrolled gather, vectorized epilogue, one dense store.
        c = jnp.concatenate([emb_row(base + t) for t in range(chunk)], axis=0)  # (chunk, E)
        if use_mul:
            c = c * scale
        if use_pe:
            if seq_len % chunk == 0:
                # Positions inside this chunk are contiguous: one vectorized slice + add.
                p0 = pl.multiple_of(base % seq_len, chunk)
                c = c + pos_ref[pl.ds(p0, chunk), :].astype(jnp.float32)
            else:
                c = c + jnp.concatenate(
                    [pos_row(base + t) for t in range(chunk)], axis=0)
        o_ref[...] = c.astype(o_ref.dtype)
    else:
        # Large chunk: rolled per-token loop (the VMEM block is still written back to
        # HBM as one dense (chunk, E) slab by the output pipeline).
        def body(t, carry):
            row = emb_row(base + t)
            if use_mul:
                row = row * scale
            if use_pe:
                row = row + pos_row(base + t)
            o_ref[pl.ds(t, 1), :] = row.astype(o_ref.dtype)
            return carry

        lax.fori_loop(0, chunk, body, 0)


def _pick_chunk(n_tokens):
    """Largest multiple-of-8 chunk dividing the flat token count, preferring >= 2 grid
    steps so both TensorCores get work on v7x."""
    for t in (512, 256, 128, 64, 32, 16, 8):
        if n_tokens % t == 0 and n_tokens // t >= 2:
            return t
    for t in (512, 256, 128, 64, 32, 16, 8):
        if n_tokens % t == 0:
            return t
    return n_tokens


def src_embedding(seq, emb_table, pos_table=None, *, embedding_mul=True, old_PE=True,
                  out_dtype=None):
    """Forward pass of SrcEmbedding (dropout in eval mode == identity)."""
    B, S = seq.shape
    V, E = emb_table.shape
    if pos_table is None:
        pos_table = jnp.zeros((8, E), emb_table.dtype)
    max_len = pos_table.shape[0]
    if old_PE:
        assert S <= max_len, "sequence length exceeds max_source_len"
    if out_dtype is None:
        out_dtype = emb_table.dtype      # e.g. pass jnp.bfloat16 to halve the store traffic
    scale = math.sqrt(E)

    n_tok = B * S
    chunk = _pick_chunk(n_tok)
    assert n_tok % chunk == 0
    num_chunks = n_tok // chunk

    ids_flat = seq.reshape(n_tok).astype(jnp.int32)

    kernel = functools.partial(
        _src_embedding_kernel, scale=scale, use_mul=embedding_mul, use_pe=old_PE,
        chunk=chunk, seq_len=S, vocab=V)

    # Explicit VMEM budget: resident tables (single copy) + double-buffered output block.
    table_bytes = (emb_table.size * emb_table.dtype.itemsize
                   + pos_table.size * pos_table.dtype.itemsize)
    out_block_bytes = 2 * chunk * E * jnp.dtype(out_dtype).itemsize
    vmem_limit = int(min(128 * 1024 * 1024,
                         max(16 * 1024 * 1024, 2 * (table_bytes + out_block_bytes))))

    def _call(table_specs):
        grid_spec = pltpu.PrefetchScalarGridSpec(
            num_scalar_prefetch=1,                      # token ids -> SMEM
            grid=(num_chunks,),
            in_specs=list(table_specs),
            out_specs=pl.BlockSpec((chunk, E), lambda j, ids: (j, 0)),
        )
        return pl.pallas_call(
            kernel,
            out_shape=jax.ShapeDtypeStruct((n_tok, E), out_dtype),
            grid_spec=grid_spec,
            compiler_params=pltpu.CompilerParams(
                dimension_semantics=("parallel",),
                vmem_limit_bytes=vmem_limit),
        )(ids_flat, emb_table, pos_table)

    try:
        # Preferred: whole-table VMEM residency (single copy, bypasses the pipeline's
        # double-buffering of constant-index blocks).
        out_flat = _call([pl.BlockSpec(memory_space=pltpu.MemorySpace.VMEM),
                          pl.BlockSpec(memory_space=pltpu.MemorySpace.VMEM)])
    except Exception:
        # Fallback: full-array blocks with a constant index_map (fetched once by the
        # pipeline, at the cost of 2x table residency).
        out_flat = _call([pl.BlockSpec((V, E), lambda j, ids: (0, 0)),
                          pl.BlockSpec((max_len, E), lambda j, ids: (0, 0))])

    return out_flat.reshape(B, S, E)


if __name__ == "__main__":
    # Small config consistent with the module's __init__:
    #   len(vocab)=64, embedding_size=128, max_source_len=16, pad_index=0,
    #   embedding_mul=True, old_PE=True, dropout (eval mode -> identity).
    VOCAB, E, MAX_LEN = 64, 128, 16
    B, S = 2, 8
    PAD = 0

    key = jax.random.PRNGKey(0)
    k_emb, k_pos, k_seq = jax.random.split(key, 3)

    emb_table = 0.02 * jax.random.normal(k_emb, (VOCAB, E), dtype=jnp.float32)
    emb_table = emb_table.at[PAD].set(0.0)          # padding_idx row is zero
    pos_table = 0.02 * jax.random.normal(k_pos, (MAX_LEN, E), dtype=jnp.float32)
    seq = jax.random.randint(k_seq, (B, S), 0, VOCAB, dtype=jnp.int32)

    out = src_embedding(seq, emb_table, pos_table, embedding_mul=True, old_PE=True)
    out = jax.block_until_ready(out)

    # pure-JAX reference
    ref = emb_table[seq] * math.sqrt(E) + pos_table[:S][None, :, :]
    assert out.shape == (B, S, E)
    assert out.dtype == emb_table.dtype
    assert jnp.allclose(out, ref, atol=1e-5, rtol=1e-5), "mismatch vs reference"

    print("KERNEL_OK")
</pallas_src>

<mosaic_0001>
module attributes {stable_mosaic.version = 11 : i64} {
  func.func @_src_embedding_kernel(%arg0: i32, %arg1: memref<16xi32, #tpu.memory_space<smem>>, %arg2: memref<64x128xf32, #tpu.memory_space<vmem>>, %arg3: memref<16x128xf32, #tpu.memory_space<vmem>>, %arg4: memref<8x128xf32, #tpu.memory_space<vmem>>) attributes {dimension_semantics = [#tpu.dimension_semantics<parallel>], iteration_bounds = array<i64: 2>, scalar_prefetch = 1 : i64, scratch_operands = 0 : i64, tpu.core_type = #tpu.core_type<tc>, window_params = [{pipeline_mode = #tpu.pipeline_mode<synchronous>, transform_indices = @transform_0, window_bounds = array<i64: 64, 128>}, {pipeline_mode = #tpu.pipeline_mode<synchronous>, transform_indices = @transform_1, window_bounds = array<i64: 16, 128>}, {transform_indices = @transform_2, window_bounds = array<i64: 8, 128>}]} {
    %c8_i32 = arith.constant 8 : i32
    %0 = arith.muli %arg0, %c8_i32 : i32
    %c0_i32 = arith.constant 0 : i32
    %1 = arith.addi %0, %c0_i32 : i32
    %2 = arith.index_cast %1 : i32 to index
    %3 = memref.load %arg1[%2] : memref<16xi32, #tpu.memory_space<smem>>
    %c0_i32_0 = arith.constant 0 : i32
    %c63_i32 = arith.constant 63 : i32
    %4 = arith.maxsi %c0_i32_0, %3 : i32
    %5 = arith.minsi %c63_i32, %4 : i32
    %6 = arith.index_cast %5 : i32 to index
    %c0 = arith.constant 0 : index
    %7 = vector.load %arg2[%6, %c0] : memref<64x128xf32, #tpu.memory_space<vmem>>, vector<1x128xf32>
    %c1_i32 = arith.constant 1 : i32
    %8 = arith.addi %0, %c1_i32 : i32
    %9 = arith.index_cast %8 : i32 to index
    %10 = memref.load %arg1[%9] : memref<16xi32, #tpu.memory_space<smem>>
    %c0_i32_1 = arith.constant 0 : i32
    %c63_i32_2 = arith.constant 63 : i32
    %11 = arith.maxsi %c0_i32_1, %10 : i32
    %12 = arith.minsi %c63_i32_2, %11 : i32
    %13 = arith.index_cast %12 : i32 to index
    %c0_3 = arith.constant 0 : index
    %14 = vector.load %arg2[%13, %c0_3] : memref<64x128xf32, #tpu.memory_space<vmem>>, vector<1x128xf32>
    %c2_i32 = arith.constant 2 : i32
    %15 = arith.addi %0, %c2_i32 : i32
    %16 = arith.index_cast %15 : i32 to index
    %17 = memref.load %arg1[%16] : memref<16xi32, #tpu.memory_space<smem>>
    %c0_i32_4 = arith.constant 0 : i32
    %c63_i32_5 = arith.constant 63 : i32
    %18 = arith.maxsi %c0_i32_4, %17 : i32
    %19 = arith.minsi %c63_i32_5, %18 : i32
    %20 = arith.index_cast %19 : i32 to index
    %c0_6 = arith.constant 0 : index
    %21 = vector.load %arg2[%20, %c0_6] : memref<64x128xf32, #tpu.memory_space<vmem>>, vector<1x128xf32>
    %c3_i32 = arith.constant 3 : i32
    %22 = arith.addi %0, %c3_i32 : i32
    %23 = arith.index_cast %22 : i32 to index
    %24 = memref.load %arg1[%23] : memref<16xi32, #tpu.memory_space<smem>>
    %c0_i32_7 = arith.constant 0 : i32
    %c63_i32_8 = arith.constant 63 : i32
    %25 = arith.maxsi %c0_i32_7, %24 : i32
    %26 = arith.minsi %c63_i32_8, %25 : i32
    %27 = arith.index_cast %26 : i32 to index
    %c0_9 = arith.constant 0 : index
    %28 = vector.load %arg2[%27, %c0_9] : memref<64x128xf32, #tpu.memory_space<vmem>>, vector<1x128xf32>
    %c4_i32 = arith.constant 4 : i32
    %29 = arith.addi %0, %c4_i32 : i32
    %30 = arith.index_cast %29 : i32 to index
    %31 = memref.load %arg1[%30] : memref<16xi32, #tpu.memory_space<smem>>
    %c0_i32_10 = arith.constant 0 : i32
    %c63_i32_11 = arith.constant 63 : i32
    %32 = arith.maxsi %c0_i32_10, %31 : i32
    %33 = arith.minsi %c63_i32_11, %32 : i32
    %34 = arith.index_cast %33 : i32 to index
    %c0_12 = arith.constant 0 : index
    %35 = vector.load %arg2[%34, %c0_12] : memref<64x128xf32, #tpu.memory_space<vmem>>, vector<1x128xf32>
    %c5_i32 = arith.constant 5 : i32
    %36 = arith.addi %0, %c5_i32 : i32
    %37 = arith.index_cast %36 : i32 to index
    %38 = memref.load %arg1[%37] : memref<16xi32, #tpu.memory_space<smem>>
    %c0_i32_13 = arith.constant 0 : i32
    %c63_i32_14 = arith.constant 63 : i32
    %39 = arith.maxsi %c0_i32_13, %38 : i32
    %40 = arith.minsi %c63_i32_14, %39 : i32
    %41 = arith.index_cast %40 : i32 to index
    %c0_15 = arith.constant 0 : index
    %42 = vector.load %arg2[%41, %c0_15] : memref<64x128xf32, #tpu.memory_space<vmem>>, vector<1x128xf32>
    %c6_i32 = arith.constant 6 : i32
    %43 = arith.addi %0, %c6_i32 : i32
    %44 = arith.index_cast %43 : i32 to index
    %45 = memref.load %arg1[%44] : memref<16xi32, #tpu.memory_space<smem>>
    %c0_i32_16 = arith.constant 0 : i32
    %c63_i32_17 = arith.constant 63 : i32
    %46 = arith.maxsi %c0_i32_16, %45 : i32
    %47 = arith.minsi %c63_i32_17, %46 : i32
    %48 = arith.index_cast %47 : i32 to index
    %c0_18 = arith.constant 0 : index
    %49 = vector.load %arg2[%48, %c0_18] : memref<64x128xf32, #tpu.memory_space<vmem>>, vector<1x128xf32>
    %c7_i32 = arith.constant 7 : i32
    %50 = arith.addi %0, %c7_i32 : i32
    %51 = arith.index_cast %50 : i32 to index
    %52 = memref.load %arg1[%51] : memref<16xi32, #tpu.memory_space<smem>>
    %c0_i32_19 = arith.constant 0 : i32
    %c63_i32_20 = arith.constant 63 : i32
    %53 = arith.maxsi %c0_i32_19, %52 : i32
    %54 = arith.minsi %c63_i32_20, %53 : i32
    %55 = arith.index_cast %54 : i32 to index
    %c0_21 = arith.constant 0 : index
    %56 = vector.load %arg2[%55, %c0_21] : memref<64x128xf32, #tpu.memory_space<vmem>>, vector<1x128xf32>
    %57 = tpu.concatenate %7, %14, %21, %28, %35, %42, %49, %56 in 0 : vector<1x128xf32>, vector<1x128xf32>, vector<1x128xf32>, vector<1x128xf32>, vector<1x128xf32>, vector<1x128xf32>, vector<1x128xf32>, vector<1x128xf32> -> vector<8x128xf32>
    %cst = arith.constant 11.3137083 : f32
    %58 = vector.broadcast %cst : f32 to vector<8x128xf32>
    %59 = arith.mulf %57, %58 : vector<8x128xf32>
    %c8_i32_22 = arith.constant 8 : i32
    %c0_i32_23 = arith.constant 0 : i32
    %60 = arith.cmpi eq, %c8_i32_22, %c0_i32_23 : i32
    %c1_i32_24 = arith.constant 1 : i32
    %61 = arith.select %60, %c1_i32_24, %c8_i32_22 : i32
    %62 = arith.remsi %0, %61 : i32
    %c0_i32_25 = arith.constant 0 : i32
    %63 = arith.cmpi ne, %62, %c0_i32_25 : i32
    %c0_i32_26 = arith.constant 0 : i32
    %64 = arith.cmpi slt, %62, %c0_i32_26 : i32
    %c0_i32_27 = arith.constant 0 : i32
    %65 = arith.cmpi slt, %61, %c0_i32_27 : i32
    %66 = arith.xori %64, %65 : i1
    %67 = arith.andi %66, %63 : i1
    %68 = arith.addi %62, %61 : i32
    %69 = arith.select %67, %68, %62 : i32
    %70 = tpu.assume_multiple %69, 8 : i32
    %71 = arith.index_cast %70 : i32 to index
    %c0_28 = arith.constant 0 : index
    %72 = vector.load %arg3[%71, %c0_28] : memref<16x128xf32, #tpu.memory_space<vmem>>, vector<8x128xf32>
    %73 = arith.addf %59, %72 : vector<8x128xf32>
    %c0_29 = arith.constant 0 : index
    %c0_30 = arith.constant 0 : index
    %74 = vector.load %arg4[%c0_29, %c0_30] : memref<8x128xf32, #tpu.memory_space<vmem>>, vector<8x128xf32>
    tpu.vector_store %arg4[%c0_29, %c0_30], %73 {strides = array<i32>} : memref<8x128xf32, #tpu.memory_space<vmem>>, vector<8x128xf32>,
    return
  }
  func.func @transform_0(%arg0: i32, %arg1: memref<16xi32, #tpu.memory_space<smem>>) -> (i32, i32) {
    %c0_i32 = arith.constant 0 : i32
    %c0_i32_0 = arith.constant 0 : i32
    %c0_i32_1 = arith.constant 0 : i32
    return %c0_i32, %c0_i32_0 : i32, i32
  }
  func.func @transform_1(%arg0: i32, %arg1: memref<16xi32, #tpu.memory_space<smem>>) -> (i32, i32) {
    %c0_i32 = arith.constant 0 : i32
    %c0_i32_0 = arith.constant 0 : i32
    %c0_i32_1 = arith.constant 0 : i32
    return %c0_i32, %c0_i32_0 : i32, i32
  }
  func.func @transform_2(%arg0: i32, %arg1: memref<16xi32, #tpu.memory_space<smem>>) -> (i32, i32) {
    %c0_i32 = arith.constant 0 : i32
    %c0_i32_0 = arith.constant 0 : i32
    return %arg0, %c0_i32 : i32, i32
  }
}

module attributes {stable_mosaic.version = 11 : i64} {
  func.func @_src_embedding_kernel(%arg0: i32, %arg1: memref<16xi32, #tpu.memory_space<smem>>, %arg2: memref<64x128xf32, #tpu.memory_space<vmem>>, %arg3: memref<16x128xf32, #tpu.memory_space<vmem>>, %arg4: memref<8x128xf32, #tpu.memory_space<vmem>>) attributes {dimension_semantics = [#tpu.dimension_semantics<parallel>], iteration_bounds = array<i64: 2>, scalar_prefetch = 1 : i64, scratch_operands = 0 : i64, tpu.core_type = #tpu.core_type<tc>, window_params = [{pipeline_mode = #tpu.pipeline_mode<synchronous>, transform_indices = @transform_0, window_bounds = array<i64: 64, 128>}, {pipeline_mode = #tpu.pipeline_mode<synchronous>, transform_indices = @transform_1, window_bounds = array<i64: 16, 128>}, {transform_indices = @transform_2, window_bounds = array<i64: 8, 128>}]} {
    %c8_i32 = arith.constant 8 : i32
    %0 = arith.muli %arg0, %c8_i32 : i32
    %c0_i32 = arith.constant 0 : i32
    %1 = arith.addi %0, %c0_i32 : i32
    %2 = arith.index_cast %1 : i32 to index
    %3 = memref.load %arg1[%2] : memref<16xi32, #tpu.memory_space<smem>>
    %c0_i32_0 = arith.constant 0 : i32
    %c63_i32 = arith.constant 63 : i32
    %4 = arith.maxsi %c0_i32_0, %3 : i32
    %5 = arith.minsi %c63_i32, %4 : i32
    %6 = arith.index_cast %5 : i32 to index
    %c0 = arith.constant 0 : index
    %7 = vector.load %arg2[%6, %c0] : memref<64x128xf32, #tpu.memory_space<vmem>>, vector<1x128xf32>
    %c1_i32 = arith.constant 1 : i32
    %8 = arith.addi %0, %c1_i32 : i32
    %9 = arith.index_cast %8 : i32 to index
    %10 = memref.load %arg1[%9] : memref<16xi32, #tpu.memory_space<smem>>
    %c0_i32_1 = arith.constant 0 : i32
    %c63_i32_2 = arith.constant 63 : i32
    %11 = arith.maxsi %c0_i32_1, %10 : i32
    %12 = arith.minsi %c63_i32_2, %11 : i32
    %13 = arith.index_cast %12 : i32 to index
    %c0_3 = arith.constant 0 : index
    %14 = vector.load %arg2[%13, %c0_3] : memref<64x128xf32, #tpu.memory_space<vmem>>, vector<1x128xf32>
    %c2_i32 = arith.constant 2 : i32
    %15 = arith.addi %0, %c2_i32 : i32
    %16 = arith.index_cast %15 : i32 to index
    %17 = memref.load %arg1[%16] : memref<16xi32, #tpu.memory_space<smem>>
    %c0_i32_4 = arith.constant 0 : i32
    %c63_i32_5 = arith.constant 63 : i32
    %18 = arith.maxsi %c0_i32_4, %17 : i32
    %19 = arith.minsi %c63_i32_5, %18 : i32
    %20 = arith.index_cast %19 : i32 to index
    %c0_6 = arith.constant 0 : index
    %21 = vector.load %arg2[%20, %c0_6] : memref<64x128xf32, #tpu.memory_space<vmem>>, vector<1x128xf32>
    %c3_i32 = arith.constant 3 : i32
    %22 = arith.addi %0, %c3_i32 : i32
    %23 = arith.index_cast %22 : i32 to index
    %24 = memref.load %arg1[%23] : memref<16xi32, #tpu.memory_space<smem>>
    %c0_i32_7 = arith.constant 0 : i32
    %c63_i32_8 = arith.constant 63 : i32
    %25 = arith.maxsi %c0_i32_7, %24 : i32
    %26 = arith.minsi %c63_i32_8, %25 : i32
    %27 = arith.index_cast %26 : i32 to index
    %c0_9 = arith.constant 0 : index
    %28 = vector.load %arg2[%27, %c0_9] : memref<64x128xf32, #tpu.memory_space<vmem>>, vector<1x128xf32>
    %c4_i32 = arith.constant 4 : i32
    %29 = arith.addi %0, %c4_i32 : i32
    %30 = arith.index_cast %29 : i32 to index
    %31 = memref.load %arg1[%30] : memref<16xi32, #tpu.memory_space<smem>>
    %c0_i32_10 = arith.constant 0 : i32
    %c63_i32_11 = arith.constant 63 : i32
    %32 = arith.maxsi %c0_i32_10, %31 : i32
    %33 = arith.minsi %c63_i32_11, %32 : i32
    %34 = arith.index_cast %33 : i32 to index
    %c0_12 = arith.constant 0 : index
    %35 = vector.load %arg2[%34, %c0_12] : memref<64x128xf32, #tpu.memory_space<vmem>>, vector<1x128xf32>
    %c5_i32 = arith.constant 5 : i32
    %36 = arith.addi %0, %c5_i32 : i32
    %37 = arith.index_cast %36 : i32 to index
    %38 = memref.load %arg1[%37] : memref<16xi32, #tpu.memory_space<smem>>
    %c0_i32_13 = arith.constant 0 : i32
    %c63_i32_14 = arith.constant 63 : i32
    %39 = arith.maxsi %c0_i32_13, %38 : i32
    %40 = arith.minsi %c63_i32_14, %39 : i32
    %41 = arith.index_cast %40 : i32 to index
    %c0_15 = arith.constant 0 : index
    %42 = vector.load %arg2[%41, %c0_15] : memref<64x128xf32, #tpu.memory_space<vmem>>, vector<1x128xf32>
    %c6_i32 = arith.constant 6 : i32
    %43 = arith.addi %0, %c6_i32 : i32
    %44 = arith.index_cast %43 : i32 to index
    %45 = memref.load %arg1[%44] : memref<16xi32, #tpu.memory_space<smem>>
    %c0_i32_16 = arith.constant 0 : i32
    %c63_i32_17 = arith.constant 63 : i32
    %46 = arith.maxsi %c0_i32_16, %45 : i32
    %47 = arith.minsi %c63_i32_17, %46 : i32
    %48 = arith.index_cast %47 : i32 to index
    %c0_18 = arith.constant 0 : index
    %49 = vector.load %arg2[%48, %c0_18] : memref<64x128xf32, #tpu.memory_space<vmem>>, vector<1x128xf32>
    %c7_i32 = arith.constant 7 : i32
    %50 = arith.addi %0, %c7_i32 : i32
    %51 = arith.index_cast %50 : i32 to index
    %52 = memref.load %arg1[%51] : memref<16xi32, #tpu.memory_space<smem>>
    %c0_i32_19 = arith.constant 0 : i32
    %c63_i32_20 = arith.constant 63 : i32
    %53 = arith.maxsi %c0_i32_19, %52 : i32
    %54 = arith.minsi %c63_i32_20, %53 : i32
    %55 = arith.index_cast %54 : i32 to index
    %c0_21 = arith.constant 0 : index
    %56 = vector.load %arg2[%55, %c0_21] : memref<64x128xf32, #tpu.memory_space<vmem>>, vector<1x128xf32>
    %57 = tpu.concatenate %7, %14, %21, %28, %35, %42, %49, %56 in 0 : vector<1x128xf32>, vector<1x128xf32>, vector<1x128xf32>, vector<1x128xf32>, vector<1x128xf32>, vector<1x128xf32>, vector<1x128xf32>, vector<1x128xf32> -> vector<8x128xf32>
    %cst = arith.constant 11.3137083 : f32
    %58 = vector.broadcast %cst : f32 to vector<8x128xf32>
    %59 = arith.mulf %57, %58 : vector<8x128xf32>
    %c8_i32_22 = arith.constant 8 : i32
    %c0_i32_23 = arith.constant 0 : i32
    %60 = arith.cmpi eq, %c8_i32_22, %c0_i32_23 : i32
    %c1_i32_24 = arith.constant 1 : i32
    %61 = arith.select %60, %c1_i32_24, %c8_i32_22 : i32
    %62 = arith.remsi %0, %61 : i32
    %c0_i32_25 = arith.constant 0 : i32
    %63 = arith.cmpi ne, %62, %c0_i32_25 : i32
    %c0_i32_26 = arith.constant 0 : i32
    %64 = arith.cmpi slt, %62, %c0_i32_26 : i32
    %c0_i32_27 = arith.constant 0 : i32
    %65 = arith.cmpi slt, %61, %c0_i32_27 : i32
    %66 = arith.xori %64, %65 : i1
    %67 = arith.andi %66, %63 : i1
    %68 = arith.addi %62, %61 : i32
    %69 = arith.select %67, %68, %62 : i32
    %70 = tpu.assume_multiple %69, 8 : i32
    %71 = arith.index_cast %70 : i32 to index
    %c0_28 = arith.constant 0 : index
    %72 = vector.load %arg3[%71, %c0_28] : memref<16x128xf32, #tpu.memory_space<vmem>>, vector<8x128xf32>
    %73 = arith.addf %59, %72 : vector<8x128xf32>
    %c0_29 = arith.constant 0 : index
    %c0_30 = arith.constant 0 : index
    %74 = vector.load %arg4[%c0_29, %c0_30] : memref<8x128xf32, #tpu.memory_space<vmem>>, vector<8x128xf32>
    tpu.vector_store %arg4[%c0_29, %c0_30], %73 {strides = array<i32>} : memref<8x128xf32, #tpu.memory_space<vmem>>, vector<8x128xf32>,
    return
  }
  func.func @transform_0(%arg0: i32, %arg1: memref<16xi32, #tpu.memory_space<smem>>) -> (i32, i32) {
    %c0_i32 = arith.constant 0 : i32
    %c0_i32_0 = arith.constant 0 : i32
    %c0_i32_1 = arith.constant 0 : i32
    return %c0_i32, %c0_i32_0 : i32, i32
  }
  func.func @transform_1(%arg0: i32, %arg1: memref<16xi32, #tpu.memory_space<smem>>) -> (i32, i32) {
    %c0_i32 = arith.constant 0 : i32
    %c0_i32_0 = arith.constant 0 : i32
    %c0_i32_1 = arith.constant 0 : i32
    return %c0_i32, %c0_i32_0 : i32, i32
  }
  func.func @transform_2(%arg0: i32, %arg1: memref<16xi32, #tpu.memory_space<smem>>) -> (i32, i32) {
    %c0_i32 = arith.constant 0 : i32
    %c0_i32_0 = arith.constant 0 : i32
    return %arg0, %c0_i32 : i32, i32
  }
}

</mosaic_0001>

<llo_original>
// kernel: tpu_custom_call.1
$region0: #{tpu_custom_call.1}
  #allocation0 [shape = 'u32[]', space=smem, size = 0x4, offset = 0x4, fixed_abs, tag = 'smem constant byte address 0x4 - core index']
  #allocation1 [shape = 'u32[144,128]{1,0:T(1,128)}', space=vmem, size = 0x12000, scoped, tag = 'internal scratch']
  #allocation2 [shape = 's32[1]{0}', space=sflag, size = 0x4, scoped, tag = 'scoped memory for tpu_custom_call.1']
  #allocation3 [shape = 'u8[512]{0}', space=smem, size = 0x200, scoped, tag = 'prefetched SMEM operand 0']
  %s0 = inlined_call_operand.hbm [shape: s32[16], index: 0, kind: input, shape index: {}]
  %s1 = inlined_call_operand.hbm [shape: f32[64,128], index: 1, kind: input, shape index: {}]
  %s2 = inlined_call_operand.hbm [shape: f32[16,128], index: 2, kind: input, shape index: {}]
  %s3 = inlined_call_operand.hbm [shape: f32[16,128], index: 3, kind: output, shape index: {}]
  %s4 = sld [smem:[#allocation0]]
  $region49: #{tpu_custom_call.1} parent=0
    _
  %s6 = ssub.s32 1, %s4
  %s7 = scalar_select 0, %s6, %s4
  %9 = dma.hbm_to_smem %s0, 16, [#allocation3], [#allocation2]
  %10 = dma.done [#allocation2], 16
  %11 = sfence
  $region1: #{tpu_custom_call.1} parent=0
    #allocation4 [shape = 'u8[32768]{0}', space=vmem, size = 0x8000, scoped, tag = 'input window, operand 1, single buffered']
    #allocation5 [shape = 's32[2]{0}', space=sflag, size = 0x8, scoped, tag = 'scoped memory for tpu_custom_call.1']
    #allocation6 [shape = 's32[2]{0}', space=sflag, size = 0x8, scoped, tag = 'scoped memory for tpu_custom_call.1']
    #allocation7 [shape = 'u8[8192]{0}', space=vmem, size = 0x2000, scoped, tag = 'input window, operand 2, single buffered']
    #allocation8 [shape = 's32[1]{0}', space=sflag, size = 0x4, scoped, tag = 'scoped memory for tpu_custom_call.1']
    #allocation9 [shape = 'u8[8192]{0}', space=vmem, size = 0x2000, scoped, tag = 'output window, operand 0']
    %12 = vsyncpa [#allocation5], 0
    %13 = vsyncpa [#allocation8], 0
    %14 = vsyncpa [#allocation6], 0
    %s15 = scalar_lea.sflag [#allocation6], 1
    %16 = vsyncpa %s15, 0
    loop: start=0, step=1, limit=4
    $region2: #{tpu_custom_call.1} parent=1 // loop_pre_header
      _
    $region3: #{tpu_custom_call.1} parent=1 // loop_header
      %s18 = sphi 0, %s22
      %p19 = scmp.ge.s32.totalorder %s18, 4
      %s26 = sphi 0, %s26
      %s28 = sphi 0, %s26
      %s29 = sphi 0, %s28
      %s43 = sphi 0, %s29
      %s47 = sphi 0, %s47
      %s49 = sphi 0, %s47
      %s50 = sphi 0, %s49
      %s64 = sphi 0, %s50
      %s70 = sphi 0, %s72
      %s73 = sphi 0, %s70
      %s74 = sphi 0, %s73
      %s90 = sphi 0, %s74
    $region4: #{tpu_custom_call.1} parent=1 // loop_header_branch
      %21 = sbr.rel (%p19) target = $region8
    $region5: #{tpu_custom_call.1} parent=1 // loop_body
      %s23 = ssub.s32 %s18, 1
      %s24 = ssub.s32 %s18, 2
      %s25 = sadd.s32 %s18, 1
      %s27 = sadd.s32 %s26, 1
      %p30 = scmp.eq.s32.totalorder %s18, 1
      %p31 = scmp.ne.s32.totalorder %s26, %s28
      %p32 = scmp.eq.s32.totalorder %s18, 0
      %p33 = por %p31, %p32
      %p34 = scmp.ne.s32.totalorder %s26, %s28
      %p35 = scmp.eq.s32.totalorder %s23, 1
      %p36 = por %p34, %p35
      %p37 = scmp.ne.s32.totalorder %s28, %s29
      %p38 = scmp.eq.s32.totalorder %s23, 0
      %p39 = por %p37, %p38
      %p40 = scmp.ne.s32.totalorder %s28, %s29
      %p41 = scmp.eq.s32.totalorder %s24, 1
      %p42 = por %p40, %p41
      %p44 = scmp.ne.s32.totalorder %s29, %s43
      %p45 = scmp.eq.s32.totalorder %s24, 0
      %p46 = por %p44, %p45
      %s48 = sadd.s32 %s47, 1
      %p51 = scmp.eq.s32.totalorder %s18, 1
      %p52 = scmp.ne.s32.totalorder %s47, %s49
      %p53 = scmp.eq.s32.totalorder %s18, 0
      %p54 = por %p52, %p53
      %p55 = scmp.ne.s32.totalorder %s47, %s49
      %p56 = scmp.eq.s32.totalorder %s23, 1
      %p57 = por %p55, %p56
      %p58 = scmp.ne.s32.totalorder %s49, %s50
      %p59 = scmp.eq.s32.totalorder %s23, 0
      %p60 = por %p58, %p59
      %p61 = scmp.ne.s32.totalorder %s49, %s50
      %p62 = scmp.eq.s32.totalorder %s24, 1
      %p63 = por %p61, %p62
      %p65 = scmp.ne.s32.totalorder %s50, %s64
      %p66 = scmp.eq.s32.totalorder %s24, 0
      %p67 = por %p65, %p66
      %s68 = ssub.s32 %s18, %s25
      %p69 = scmp.eq.s32.totalorder %s68, 0
      %s71 = sadd.s32 %s70, 1
      %s72 = scalar_select %p69, %s70, %s71
      %p75 = pneg %p69
      %p76 = scmp.eq.s32.totalorder %s18, 1
      %p77 = por %p75, %p76
      %p78 = scmp.ne.s32.totalorder %s70, %s73
      %p79 = scmp.eq.s32.totalorder %s18, 0
      %p80 = por %p78, %p79
      %p81 = scmp.ne.s32.totalorder %s70, %s73
      %p82 = scmp.eq.s32.totalorder %s23, 1
      %p83 = por %p81, %p82
      %p84 = scmp.ne.s32.totalorder %s73, %s74
      %p85 = scmp.eq.s32.totalorder %s23, 0
      %p86 = por %p84, %p85
      %p87 = scmp.ne.s32.totalorder %s73, %s74
      %p88 = scmp.eq.s32.totalorder %s24, 1
      %p89 = por %p87, %p88
      %p91 = scmp.ne.s32.totalorder %s74, %s90
      %p92 = scmp.eq.s32.totalorder %s24, 0
      %p93 = por %p91, %p92
      %p94 = scmp.le.s32.totalorder 1, %s18
      %p95 = scmp.lt.s32.totalorder %s18, 3
      %p96 = pnand %p94, %p95
      %p97 = pneg %p96
      // Predicated region
      $region9: #{tpu_custom_call.1} parent=5 // pred_check
        _
      $region10: #{tpu_custom_call.1} parent=5 // pred_check_branch
        %99 = sbr.rel (%p96) target = $region12
      $region11: #{tpu_custom_call.1} parent=5 // pred_region
        %s100 = ssub.s32 %s18, 1
        // Predicated region
        $region13: #{tpu_custom_call.1} parent=11 // pred_check
          %p101 = pneg %p39
        $region14: #{tpu_custom_call.1} parent=11 // pred_check_branch
          %103 = sbr.rel (%p101) target = $region16
        $region15: #{tpu_custom_call.1} parent=11 // pred_region
          %s105 = ssub.s32 1024, 1024
          %106 = vsyncadd [#allocation5], %s105
          %s107 = sshll.u32 [#allocation4], 4
          %s108 = int_to_ptr.vmem [resolvable:$true] %s107
          %113 = dma.hbm_to_vmem [thread:$0]  %s1, 1024, %s108, [#allocation5], 128, 128, 8
        $region16: #{tpu_custom_call.1} parent=11 // pred_fallthru
          _
        // Predicated region
        $region17: #{tpu_custom_call.1} parent=11 // pred_check
          %p114 = pneg %p60
        $region18: #{tpu_custom_call.1} parent=11 // pred_check_branch
          %116 = sbr.rel (%p114) target = $region20
        $region19: #{tpu_custom_call.1} parent=11 // pred_region
          %s118 = ssub.s32 256, 256
          %119 = vsyncadd [#allocation8], %s118
          %s120 = sshll.u32 [#allocation7], 4
          %s121 = int_to_ptr.vmem [resolvable:$true] %s120
          %126 = dma.hbm_to_vmem [thread:$0]  %s2, 256, %s121, [#allocation8], 128, 128, 8
        $region20: #{tpu_custom_call.1} parent=11 // pred_fallthru
          _
      $region12: #{tpu_custom_call.1} parent=5 // pred_fallthru
        _
      %p127 = scmp.lt.s32.totalorder %s18, 2
      // Predicated region
      $region21: #{tpu_custom_call.1} parent=5 // pred_check
        %p128 = pneg %p127
      $region22: #{tpu_custom_call.1} parent=5 // pred_check_branch
        %130 = sbr.rel (%p128) target = $region24
      $region23: #{tpu_custom_call.1} parent=5 // pred_region
        _
      $region24: #{tpu_custom_call.1} parent=5 // pred_fallthru
        _
      %p131 = scmp.le.s32.totalorder 1, %s18
      %p132 = scmp.lt.s32.totalorder %s18, 3
      %p133 = pnand %p131, %p132
      %p134 = pneg %p133
      // Predicated region
      $region25: #{tpu_custom_call.1} parent=5 // pred_check
        _
      $region26: #{tpu_custom_call.1} parent=5 // pred_check_branch
        %136 = sbr.rel (%p133) target = $region28
      $region27: #{tpu_custom_call.1} parent=5 // pred_region
        %s137 = ssub.s32 %s18, 1
        // Predicated region
        $region29: #{tpu_custom_call.1} parent=27 // pred_check
          %p138 = pneg %p39
        $region30: #{tpu_custom_call.1} parent=27 // pred_check_branch
          %140 = sbr.rel (%p138) target = $region32
        $region31: #{tpu_custom_call.1} parent=27 // pred_region
          %141 = dma.done [#allocation5], 1024
        $region32: #{tpu_custom_call.1} parent=27 // pred_fallthru
          _
        // Predicated region
        $region33: #{tpu_custom_call.1} parent=27 // pred_check
          %p142 = pneg %p60
        $region34: #{tpu_custom_call.1} parent=27 // pred_check_branch
          %144 = sbr.rel (%p142) target = $region36
        $region35: #{tpu_custom_call.1} parent=27 // pred_region
          %145 = dma.done [#allocation8], 256
        $region36: #{tpu_custom_call.1} parent=27 // pred_fallthru
          _
        %p146 = pneg %p39
        %p147 = pneg %p36
        %p148 = pneg %p60
        %p149 = pneg %p57
        %p150 = pneg %p86
        %p151 = pneg %p83
        %s152 = sand.u32 %s73, 1
        %s153 = scalar_lea.sflag [#allocation6], %s152
        %s154 = sand.u32 %s73, 1
        %s155 = smul.addr %s154, 8
        %s156 = scalar_lea.vmem [#allocation9], %s155
        %s157 = smul.u32 %s23, 8
        %s158 = sld [smem:[#allocation3 + %s157]]
        %p159 = scmp.gt.s32.totalorder %s158, 0
        %s160 = scalar_select %p159, %s158, 0
        %p161 = scmp.lt.s32.totalorder %s160, 63
        %s162 = scalar_select %p161, %s160, 63
        %s163 = scalar_lea.vmem [#allocation4], %s162
        %v164 = vld [vmem:[%s163] sm:$0x1]
        %s165 = sadd.s32 %s157, 1
        %s166 = sld [smem:[#allocation3 + %s165]]
        %p167 = scmp.gt.s32.totalorder %s166, 0
        %s168 = scalar_select %p167, %s166, 0
        %p169 = scmp.lt.s32.totalorder %s168, 63
        %s170 = scalar_select %p169, %s168, 63
        %s171 = scalar_lea.vmem [#allocation4], %s170
        %v172 = vld [vmem:[%s171] sm:$0x1]
        %s173 = sadd.s32 %s157, 2
        %s174 = sld [smem:[#allocation3 + %s173]]
        %p175 = scmp.gt.s32.totalorder %s174, 0
        %s176 = scalar_select %p175, %s174, 0
        %p177 = scmp.lt.s32.totalorder %s176, 63
        %s178 = scalar_select %p177, %s176, 63
        %s179 = scalar_lea.vmem [#allocation4], %s178
        %v180 = vld [vmem:[%s179] sm:$0x1]
        %s181 = sadd.s32 %s157, 3
        %s182 = sld [smem:[#allocation3 + %s181]]
        %p183 = scmp.gt.s32.totalorder %s182, 0
        %s184 = scalar_select %p183, %s182, 0
        %p185 = scmp.lt.s32.totalorder %s184, 63
        %s186 = scalar_select %p185, %s184, 63
        %s187 = scalar_lea.vmem [#allocation4], %s186
        %v188 = vld [vmem:[%s187] sm:$0x1]
        %s189 = sadd.s32 %s157, 4
        %s190 = sld [smem:[#allocation3 + %s189]]
        %p191 = scmp.gt.s32.totalorder %s190, 0
        %s192 = scalar_select %p191, %s190, 0
        %p193 = scmp.lt.s32.totalorder %s192, 63
        %s194 = scalar_select %p193, %s192, 63
        %s195 = scalar_lea.vmem [#allocation4], %s194
        %v196 = vld [vmem:[%s195] sm:$0x1]
        %s197 = sadd.s32 %s157, 5
        %s198 = sld [smem:[#allocation3 + %s197]]
        %p199 = scmp.gt.s32.totalorder %s198, 0
        %s200 = scalar_select %p199, %s198, 0
        %p201 = scmp.lt.s32.totalorder %s200, 63
        %s202 = scalar_select %p201, %s200, 63
        %s203 = scalar_lea.vmem [#allocation4], %s202
        %v204 = vld [vmem:[%s203] sm:$0x1]
        %s205 = sadd.s32 %s157, 6
        %s206 = sld [smem:[#allocation3 + %s205]]
        %p207 = scmp.gt.s32.totalorder %s206, 0
        %s208 = scalar_select %p207, %s206, 0
        %p209 = scmp.lt.s32.totalorder %s208, 63
        %s210 = scalar_select %p209, %s208, 63
        %s211 = scalar_lea.vmem [#allocation4], %s210
        %v212 = vld [vmem:[%s211] sm:$0x1]
        %s213 = sadd.s32 %s157, 7
        %s214 = sld [smem:[#allocation3 + %s213]]
        %p215 = scmp.gt.s32.totalorder %s214, 0
        %s216 = scalar_select %p215, %s214, 0
        %p217 = scmp.lt.s32.totalorder %s216, 63
        %s218 = scalar_select %p217, %s216, 63
        %s219 = scalar_lea.vmem [#allocation4], %s218
        %v220 = vld [vmem:[%s219] sm:$0x1]
        %v222 = vrot.slane %v172, 7
        %v225 = vrot.slane %v180, 6
        %v228 = vrot.slane %v188, 5
        %v231 = vrot.slane %v196, 4
        %v234 = vrot.slane %v204, 3
        %v237 = vrot.slane %v212, 2
        %v240 = vrot.slane %v220, 1
        %vm242 = vcmask 1040384
        %v243 = vsel %vm242, %v164, %v222
        %vm244 = vcmask 1041408
        %v245 = vsel %vm244, %v243, %v225
        %vm246 = vcmask 1042432
        %v247 = vsel %vm246, %v245, %v228
        %vm248 = vcmask 1043456
        %v249 = vsel %vm248, %v247, %v231
        %vm250 = vcmask 1044480
        %v251 = vsel %vm250, %v249, %v234
        %vm252 = vcmask 1045504
        %v253 = vsel %vm252, %v251, %v237
        %vm254 = vcmask 1046528
        %v255 = vsel %vm254, %v253, %v240
        %v256 = vmul.f32 %v255, 11.313708
        %p257 = scmp.lt.s32.totalorder %s157, 0
        %s258 = ssub.s32 0, %s157
        %s259 = scalar_select %p257, %s258, %s157
        %s260 = sand.u32 %s259, 7
        %s261 = ssub.s32 0, %s260
        %s262 = scalar_select %p257, %s261, %s260
        %p263 = scmp.ne.s32.totalorder %s262, 0
        %p264 = scmp.lt.s32.totalorder %s262, 0
        %p265 = pnand %p264, %p263
        %p266 = pneg %p265
        %s267 = sadd.s32 %s262, 8
        %s268 = scalar_select %p266, %s267, %s262
        %s269 = scalar_lea.vmem [#allocation7], %s268
        %v270 = vld [vmem:[%s269] sm:$0xff]
        %v271 = vadd.f32 %v256, %v270
        %272 = vst [vmem:[%s156] sm:$0xff] %v271
        %s273 = sand.u32 %s73, 1
        %s274 = scalar_lea.sflag [#allocation6], %s273
        %s275 = sand.u32 %s73, 1
        %s276 = smul.addr %s275, 8
        %s277 = scalar_lea.vmem [#allocation9], %s276
        // Predicated region
        $region37: #{tpu_custom_call.1} parent=27 // pred_check
          %p278 = pneg %p83
        $region38: #{tpu_custom_call.1} parent=27 // pred_check_branch
          %280 = sbr.rel (%p278) target = $region40
        $region39: #{tpu_custom_call.1} parent=27 // pred_region
          %s282 = ssub.s32 128, 128
          %283 = vsyncadd %s274, %s282
          %s284 = smul.addr %s23, 128
          %s285 = scalar_lea.hbm %s3, %s284
          %s287 = sshll.u32 %s277, 4
          %s288 = int_to_ptr.vmem [resolvable:$true] %s287
          %290 = dma.vmem_to_hbm [thread:$0]  %s288, 128, %s285, %s274
        $region40: #{tpu_custom_call.1} parent=27 // pred_fallthru
          _
      $region28: #{tpu_custom_call.1} parent=5 // pred_fallthru
        _
      %p291 = scmp.le.s32.totalorder 2, %s18
      // Predicated region
      $region41: #{tpu_custom_call.1} parent=5 // pred_check
        %p292 = pneg %p291
      $region42: #{tpu_custom_call.1} parent=5 // pred_check_branch
        %294 = sbr.rel (%p292) target = $region44
      $region43: #{tpu_custom_call.1} parent=5 // pred_region
        %s295 = ssub.s32 %s18, 2
        // Predicated region
        $region45: #{tpu_custom_call.1} parent=43 // pred_check
          %p296 = pneg %p89
        $region46: #{tpu_custom_call.1} parent=43 // pred_check_branch
          %298 = sbr.rel (%p296) target = $region48
        $region47: #{tpu_custom_call.1} parent=43 // pred_region
          %s299 = sand.u32 %s74, 1
          %s300 = scalar_lea.sflag [#allocation6], %s299
          %s301 = sand.u32 %s74, 1
          %s302 = smul.addr %s301, 8
          %s303 = scalar_lea.vmem [#allocation9], %s302
          %304 = dma.done %s300, 128
        $region48: #{tpu_custom_call.1} parent=43 // pred_fallthru
          _
      $region44: #{tpu_custom_call.1} parent=5 // pred_fallthru
        _
    $region6: #{tpu_custom_call.1} parent=1 // loop_footer
      %s22 = sadd.s32 1, %s18
    $region7: #{tpu_custom_call.1} parent=1 // loop_footer_branch
      %17 = sbr.rel target = $region3
    $region8: #{tpu_custom_call.1} parent=1 // loop_exit
      _
    %305 = vsyncpa [#allocation5], 1
    %s306 = scalar_lea.sflag [#allocation5], 1
    %307 = vsyncpa %s306, 1
    %308 = vsyncpa [#allocation8], 1
    %309 = vsyncpa [#allocation6], 1
    %s310 = scalar_lea.sflag [#allocation6], 1
    %311 = vsyncpa %s310, 1

// kernel: tpu_custom_call.1
$region0: #{tpu_custom_call.1}
  #allocation0 [shape = 'u32[]', space=smem, size = 0x4, offset = 0x4, fixed_abs, tag = 'smem constant byte address 0x4 - core index']
  #allocation1 [shape = 'u32[144,128]{1,0:T(1,128)}', space=vmem, size = 0x12000, scoped, tag = 'internal scratch']
  #allocation2 [shape = 's32[1]{0}', space=sflag, size = 0x4, scoped, tag = 'scoped memory for tpu_custom_call.1']
  #allocation3 [shape = 'u8[512]{0}', space=smem, size = 0x200, scoped, tag = 'prefetched SMEM operand 0']
  %s0 = inlined_call_operand.hbm [shape: s32[16], index: 0, kind: input, shape index: {}]
  %s1 = inlined_call_operand.hbm [shape: f32[64,128], index: 1, kind: input, shape index: {}]
  %s2 = inlined_call_operand.hbm [shape: f32[16,128], index: 2, kind: input, shape index: {}]
  %s3 = inlined_call_operand.hbm [shape: f32[16,128], index: 3, kind: output, shape index: {}]
  %s4 = sld [smem:[#allocation0]]
  $region49: #{tpu_custom_call.1} parent=0
    _
  %s6 = ssub.s32 1, %s4
  %s7 = scalar_select 0, %s6, %s4
  %9 = dma.hbm_to_smem %s0, 16, [#allocation3], [#allocation2]
  %10 = dma.done [#allocation2], 16
  %11 = sfence
  $region1: #{tpu_custom_call.1} parent=0
    #allocation4 [shape = 'u8[32768]{0}', space=vmem, size = 0x8000, scoped, tag = 'input window, operand 1, single buffered']
    #allocation5 [shape = 's32[2]{0}', space=sflag, size = 0x8, scoped, tag = 'scoped memory for tpu_custom_call.1']
    #allocation6 [shape = 's32[2]{0}', space=sflag, size = 0x8, scoped, tag = 'scoped memory for tpu_custom_call.1']
    #allocation7 [shape = 'u8[8192]{0}', space=vmem, size = 0x2000, scoped, tag = 'input window, operand 2, single buffered']
    #allocation8 [shape = 's32[1]{0}', space=sflag, size = 0x4, scoped, tag = 'scoped memory for tpu_custom_call.1']
    #allocation9 [shape = 'u8[8192]{0}', space=vmem, size = 0x2000, scoped, tag = 'output window, operand 0']
    %12 = vsyncpa [#allocation5], 0
    %13 = vsyncpa [#allocation8], 0
    %14 = vsyncpa [#allocation6], 0
    %s15 = scalar_lea.sflag [#allocation6], 1
    %16 = vsyncpa %s15, 0
    loop: start=0, step=1, limit=4
    $region2: #{tpu_custom_call.1} parent=1 // loop_pre_header
      _
    $region3: #{tpu_custom_call.1} parent=1 // loop_header
      %s18 = sphi 0, %s22
      %p19 = scmp.ge.s32.totalorder %s18, 4
      %s26 = sphi 0, %s26
      %s28 = sphi 0, %s26
      %s29 = sphi 0, %s28
      %s43 = sphi 0, %s29
      %s47 = sphi 0, %s47
      %s49 = sphi 0, %s47
      %s50 = sphi 0, %s49
      %s64 = sphi 0, %s50
      %s70 = sphi 0, %s72
      %s73 = sphi 0, %s70
      %s74 = sphi 0, %s73
      %s90 = sphi 0, %s74
    $region4: #{tpu_custom_call.1} parent=1 // loop_header_branch
      %21 = sbr.rel (%p19) target = $region8
    $region5: #{tpu_custom_call.1} parent=1 // loop_body
      %s23 = ssub.s32 %s18, 1
      %s24 = ssub.s32 %s18, 2
      %s25 = sadd.s32 %s18, 1
      %s27 = sadd.s32 %s26, 1
      %p30 = scmp.eq.s32.totalorder %s18, 1
      %p31 = scmp.ne.s32.totalorder %s26, %s28
      %p32 = scmp.eq.s32.totalorder %s18, 0
      %p33 = por %p31, %p32
      %p34 = scmp.ne.s32.totalorder %s26, %s28
      %p35 = scmp.eq.s32.totalorder %s23, 1
      %p36 = por %p34, %p35
      %p37 = scmp.ne.s32.totalorder %s28, %s29
      %p38 = scmp.eq.s32.totalorder %s23, 0
      %p39 = por %p37, %p38
      %p40 = scmp.ne.s32.totalorder %s28, %s29
      %p41 = scmp.eq.s32.totalorder %s24, 1
      %p42 = por %p40, %p41
      %p44 = scmp.ne.s32.totalorder %s29, %s43
      %p45 = scmp.eq.s32.totalorder %s24, 0
      %p46 = por %p44, %p45
      %s48 = sadd.s32 %s47, 1
      %p51 = scmp.eq.s32.totalorder %s18, 1
      %p52 = scmp.ne.s32.totalorder %s47, %s49
      %p53 = scmp.eq.s32.totalorder %s18, 0
      %p54 = por %p52, %p53
      %p55 = scmp.ne.s32.totalorder %s47, %s49
      %p56 = scmp.eq.s32.totalorder %s23, 1
      %p57 = por %p55, %p56
      %p58 = scmp.ne.s32.totalorder %s49, %s50
      %p59 = scmp.eq.s32.totalorder %s23, 0
      %p60 = por %p58, %p59
      %p61 = scmp.ne.s32.totalorder %s49, %s50
      %p62 = scmp.eq.s32.totalorder %s24, 1
      %p63 = por %p61, %p62
      %p65 = scmp.ne.s32.totalorder %s50, %s64
      %p66 = scmp.eq.s32.totalorder %s24, 0
      %p67 = por %p65, %p66
      %s68 = ssub.s32 %s18, %s25
      %p69 = scmp.eq.s32.totalorder %s68, 0
      %s71 = sadd.s32 %s70, 1
      %s72 = scalar_select %p69, %s70, %s71
      %p75 = pneg %p69
      %p76 = scmp.eq.s32.totalorder %s18, 1
      %p77 = por %p75, %p76
      %p78 = scmp.ne.s32.totalorder %s70, %s73
      %p79 = scmp.eq.s32.totalorder %s18, 0
      %p80 = por %p78, %p79
      %p81 = scmp.ne.s32.totalorder %s70, %s73
      %p82 = scmp.eq.s32.totalorder %s23, 1
      %p83 = por %p81, %p82
      %p84 = scmp.ne.s32.totalorder %s73, %s74
      %p85 = scmp.eq.s32.totalorder %s23, 0
      %p86 = por %p84, %p85
      %p87 = scmp.ne.s32.totalorder %s73, %s74
      %p88 = scmp.eq.s32.totalorder %s24, 1
      %p89 = por %p87, %p88
      %p91 = scmp.ne.s32.totalorder %s74, %s90
      %p92 = scmp.eq.s32.totalorder %s24, 0
      %p93 = por %p91, %p92
      %p94 = scmp.le.s32.totalorder 1, %s18
      %p95 = scmp.lt.s32.totalorder %s18, 3
      %p96 = pnand %p94, %p95
      %p97 = pneg %p96
      // Predicated region
      $region9: #{tpu_custom_call.1} parent=5 // pred_check
        _
      $region10: #{tpu_custom_call.1} parent=5 // pred_check_branch
        %99 = sbr.rel (%p96) target = $region12
      $region11: #{tpu_custom_call.1} parent=5 // pred_region
        %s100 = ssub.s32 %s18, 1
        // Predicated region
        $region13: #{tpu_custom_call.1} parent=11 // pred_check
          %p101 = pneg %p39
        $region14: #{tpu_custom_call.1} parent=11 // pred_check_branch
          %103 = sbr.rel (%p101) target = $region16
        $region15: #{tpu_custom_call.1} parent=11 // pred_region
          %s105 = ssub.s32 1024, 1024
          %106 = vsyncadd [#allocation5], %s105
          %s107 = sshll.u32 [#allocation4], 4
          %s108 = int_to_ptr.vmem [resolvable:$true] %s107
          %113 = dma.hbm_to_vmem [thread:$0]  %s1, 1024, %s108, [#allocation5], 128, 128, 8
        $region16: #{tpu_custom_call.1} parent=11 // pred_fallthru
          _
        // Predicated region
        $region17: #{tpu_custom_call.1} parent=11 // pred_check
          %p114 = pneg %p60
        $region18: #{tpu_custom_call.1} parent=11 // pred_check_branch
          %116 = sbr.rel (%p114) target = $region20
        $region19: #{tpu_custom_call.1} parent=11 // pred_region
          %s118 = ssub.s32 256, 256
          %119 = vsyncadd [#allocation8], %s118
          %s120 = sshll.u32 [#allocation7], 4
          %s121 = int_to_ptr.vmem [resolvable:$true] %s120
          %126 = dma.hbm_to_vmem [thread:$0]  %s2, 256, %s121, [#allocation8], 128, 128, 8
        $region20: #{tpu_custom_call.1} parent=11 // pred_fallthru
          _
      $region12: #{tpu_custom_call.1} parent=5 // pred_fallthru
        _
      %p127 = scmp.lt.s32.totalorder %s18, 2
      // Predicated region
      $region21: #{tpu_custom_call.1} parent=5 // pred_check
        %p128 = pneg %p127
      $region22: #{tpu_custom_call.1} parent=5 // pred_check_branch
        %130 = sbr.rel (%p128) target = $region24
      $region23: #{tpu_custom_call.1} parent=5 // pred_region
        _
      $region24: #{tpu_custom_call.1} parent=5 // pred_fallthru
        _
      %p131 = scmp.le.s32.totalorder 1, %s18
      %p132 = scmp.lt.s32.totalorder %s18, 3
      %p133 = pnand %p131, %p132
      %p134 = pneg %p133
      // Predicated region
      $region25: #{tpu_custom_call.1} parent=5 // pred_check
        _
      $region26: #{tpu_custom_call.1} parent=5 // pred_check_branch
        %136 = sbr.rel (%p133) target = $region28
      $region27: #{tpu_custom_call.1} parent=5 // pred_region
        %s137 = ssub.s32 %s18, 1
        // Predicated region
        $region29: #{tpu_custom_call.1} parent=27 // pred_check
          %p138 = pneg %p39
        $region30: #{tpu_custom_call.1} parent=27 // pred_check_branch
          %140 = sbr.rel (%p138) target = $region32
        $region31: #{tpu_custom_call.1} parent=27 // pred_region
          %141 = dma.done [#allocation5], 1024
        $region32: #{tpu_custom_call.1} parent=27 // pred_fallthru
          _
        // Predicated region
        $region33: #{tpu_custom_call.1} parent=27 // pred_check
          %p142 = pneg %p60
        $region34: #{tpu_custom_call.1} parent=27 // pred_check_branch
          %144 = sbr.rel (%p142) target = $region36
        $region35: #{tpu_custom_call.1} parent=27 // pred_region
          %145 = dma.done [#allocation8], 256
        $region36: #{tpu_custom_call.1} parent=27 // pred_fallthru
          _
        %p146 = pneg %p39
        %p147 = pneg %p36
        %p148 = pneg %p60
        %p149 = pneg %p57
        %p150 = pneg %p86
        %p151 = pneg %p83
        %s152 = sand.u32 %s73, 1
        %s153 = scalar_lea.sflag [#allocation6], %s152
        %s154 = sand.u32 %s73, 1
        %s155 = smul.addr %s154, 8
        %s156 = scalar_lea.vmem [#allocation9], %s155
        %s157 = smul.u32 %s23, 8
        %s158 = sld [smem:[#allocation3 + %s157]]
        %p159 = scmp.gt.s32.totalorder %s158, 0
        %s160 = scalar_select %p159, %s158, 0
        %p161 = scmp.lt.s32.totalorder %s160, 63
        %s162 = scalar_select %p161, %s160, 63
        %s163 = scalar_lea.vmem [#allocation4], %s162
        %v164 = vld [vmem:[%s163] sm:$0x1]
        %s165 = sadd.s32 %s157, 1
        %s166 = sld [smem:[#allocation3 + %s165]]
        %p167 = scmp.gt.s32.totalorder %s166, 0
        %s168 = scalar_select %p167, %s166, 0
        %p169 = scmp.lt.s32.totalorder %s168, 63
        %s170 = scalar_select %p169, %s168, 63
        %s171 = scalar_lea.vmem [#allocation4], %s170
        %v172 = vld [vmem:[%s171] sm:$0x1]
        %s173 = sadd.s32 %s157, 2
        %s174 = sld [smem:[#allocation3 + %s173]]
        %p175 = scmp.gt.s32.totalorder %s174, 0
        %s176 = scalar_select %p175, %s174, 0
        %p177 = scmp.lt.s32.totalorder %s176, 63
        %s178 = scalar_select %p177, %s176, 63
        %s179 = scalar_lea.vmem [#allocation4], %s178
        %v180 = vld [vmem:[%s179] sm:$0x1]
        %s181 = sadd.s32 %s157, 3
        %s182 = sld [smem:[#allocation3 + %s181]]
        %p183 = scmp.gt.s32.totalorder %s182, 0
        %s184 = scalar_select %p183, %s182, 0
        %p185 = scmp.lt.s32.totalorder %s184, 63
        %s186 = scalar_select %p185, %s184, 63
        %s187 = scalar_lea.vmem [#allocation4], %s186
        %v188 = vld [vmem:[%s187] sm:$0x1]
        %s189 = sadd.s32 %s157, 4
        %s190 = sld [smem:[#allocation3 + %s189]]
        %p191 = scmp.gt.s32.totalorder %s190, 0
        %s192 = scalar_select %p191, %s190, 0
        %p193 = scmp.lt.s32.totalorder %s192, 63
        %s194 = scalar_select %p193, %s192, 63
        %s195 = scalar_lea.vmem [#allocation4], %s194
        %v196 = vld [vmem:[%s195] sm:$0x1]
        %s197 = sadd.s32 %s157, 5
        %s198 = sld [smem:[#allocation3 + %s197]]
        %p199 = scmp.gt.s32.totalorder %s198, 0
        %s200 = scalar_select %p199, %s198, 0
        %p201 = scmp.lt.s32.totalorder %s200, 63
        %s202 = scalar_select %p201, %s200, 63
        %s203 = scalar_lea.vmem [#allocation4], %s202
        %v204 = vld [vmem:[%s203] sm:$0x1]
        %s205 = sadd.s32 %s157, 6
        %s206 = sld [smem:[#allocation3 + %s205]]
        %p207 = scmp.gt.s32.totalorder %s206, 0
        %s208 = scalar_select %p207, %s206, 0
        %p209 = scmp.lt.s32.totalorder %s208, 63
        %s210 = scalar_select %p209, %s208, 63
        %s211 = scalar_lea.vmem [#allocation4], %s210
        %v212 = vld [vmem:[%s211] sm:$0x1]
        %s213 = sadd.s32 %s157, 7
        %s214 = sld [smem:[#allocation3 + %s213]]
        %p215 = scmp.gt.s32.totalorder %s214, 0
        %s216 = scalar_select %p215, %s214, 0
        %p217 = scmp.lt.s32.totalorder %s216, 63
        %s218 = scalar_select %p217, %s216, 63
        %s219 = scalar_lea.vmem [#allocation4], %s218
        %v220 = vld [vmem:[%s219] sm:$0x1]
        %v222 = vrot.slane %v172, 7
        %v225 = vrot.slane %v180, 6
        %v228 = vrot.slane %v188, 5
        %v231 = vrot.slane %v196, 4
        %v234 = vrot.slane %v204, 3
        %v237 = vrot.slane %v212, 2
        %v240 = vrot.slane %v220, 1
        %vm242 = vcmask 1040384
        %v243 = vsel %vm242, %v164, %v222
        %vm244 = vcmask 1041408
        %v245 = vsel %vm244, %v243, %v225
        %vm246 = vcmask 1042432
        %v247 = vsel %vm246, %v245, %v228
        %vm248 = vcmask 1043456
        %v249 = vsel %vm248, %v247, %v231
        %vm250 = vcmask 1044480
        %v251 = vsel %vm250, %v249, %v234
        %vm252 = vcmask 1045504
        %v253 = vsel %vm252, %v251, %v237
        %vm254 = vcmask 1046528
        %v255 = vsel %vm254, %v253, %v240
        %v256 = vmul.f32 %v255, 11.313708
        %p257 = scmp.lt.s32.totalorder %s157, 0
        %s258 = ssub.s32 0, %s157
        %s259 = scalar_select %p257, %s258, %s157
        %s260 = sand.u32 %s259, 7
        %s261 = ssub.s32 0, %s260
        %s262 = scalar_select %p257, %s261, %s260
        %p263 = scmp.ne.s32.totalorder %s262, 0
        %p264 = scmp.lt.s32.totalorder %s262, 0
        %p265 = pnand %p264, %p263
        %p266 = pneg %p265
        %s267 = sadd.s32 %s262, 8
        %s268 = scalar_select %p266, %s267, %s262
        %s269 = scalar_lea.vmem [#allocation7], %s268
        %v270 = vld [vmem:[%s269] sm:$0xff]
        %v271 = vadd.f32 %v256, %v270
        %272 = vst [vmem:[%s156] sm:$0xff] %v271
        %s273 = sand.u32 %s73, 1
        %s274 = scalar_lea.sflag [#allocation6], %s273
        %s275 = sand.u32 %s73, 1
        %s276 = smul.addr %s275, 8
        %s277 = scalar_lea.vmem [#allocation9], %s276
        // Predicated region
        $region37: #{tpu_custom_call.1} parent=27 // pred_check
          %p278 = pneg %p83
        $region38: #{tpu_custom_call.1} parent=27 // pred_check_branch
          %280 = sbr.rel (%p278) target = $region40
        $region39: #{tpu_custom_call.1} parent=27 // pred_region
          %s282 = ssub.s32 128, 128
          %283 = vsyncadd %s274, %s282
          %s284 = smul.addr %s23, 128
          %s285 = scalar_lea.hbm %s3, %s284
          %s287 = sshll.u32 %s277, 4
          %s288 = int_to_ptr.vmem [resolvable:$true] %s287
          %290 = dma.vmem_to_hbm [thread:$0]  %s288, 128, %s285, %s274
        $region40: #{tpu_custom_call.1} parent=27 // pred_fallthru
          _
      $region28: #{tpu_custom_call.1} parent=5 // pred_fallthru
        _
      %p291 = scmp.le.s32.totalorder 2, %s18
      // Predicated region
      $region41: #{tpu_custom_call.1} parent=5 // pred_check
        %p292 = pneg %p291
      $region42: #{tpu_custom_call.1} parent=5 // pred_check_branch
        %294 = sbr.rel (%p292) target = $region44
      $region43: #{tpu_custom_call.1} parent=5 // pred_region
        %s295 = ssub.s32 %s18, 2
        // Predicated region
        $region45: #{tpu_custom_call.1} parent=43 // pred_check
          %p296 = pneg %p89
        $region46: #{tpu_custom_call.1} parent=43 // pred_check_branch
          %298 = sbr.rel (%p296) target = $region48
        $region47: #{tpu_custom_call.1} parent=43 // pred_region
          %s299 = sand.u32 %s74, 1
          %s300 = scalar_lea.sflag [#allocation6], %s299
          %s301 = sand.u32 %s74, 1
          %s302 = smul.addr %s301, 8
          %s303 = scalar_lea.vmem [#allocation9], %s302
          %304 = dma.done %s300, 128
        $region48: #{tpu_custom_call.1} parent=43 // pred_fallthru
          _
      $region44: #{tpu_custom_call.1} parent=5 // pred_fallthru
        _
    $region6: #{tpu_custom_call.1} parent=1 // loop_footer
      %s22 = sadd.s32 1, %s18
    $region7: #{tpu_custom_call.1} parent=1 // loop_footer_branch
      %17 = sbr.rel target = $region3
    $region8: #{tpu_custom_call.1} parent=1 // loop_exit
      _
    %305 = vsyncpa [#allocation5], 1
    %s306 = scalar_lea.sflag [#allocation5], 1
    %307 = vsyncpa %s306, 1
    %308 = vsyncpa [#allocation8], 1
    %309 = vsyncpa [#allocation6], 1
    %s310 = scalar_lea.sflag [#allocation6], 1
    %311 = vsyncpa %s310, 1

</llo_original>
